<compile_context>
chip_gen: v5e
topology: v5e:2x2
jax: 0.10.0
libtpu: 0.0.40
codegen_flags: <defaults>
</compile_context>

<pallas_src>
import functools

import jax
import jax.numpy as jnp
from jax.experimental import pallas as pl
from jax.experimental.pallas import tpu as pltpu


def _decoder_kernel(z_ref, c_ref, w0z_ref, w0c_ref, w1_ref, w2_ref, o_ref):
    """Fused 3-layer MLP with fused input concat.

    h0 = relu(z @ W0z + c @ W0c); h1 = relu(h0 @ W1); out = h1 @ W2.
    Weights arrive as bf16; activations are cast to bf16 at each dot input and
    accumulated in f32 on the MXU. ReLU / adds stay in f32 (v5e-friendly).
    """
    z = z_ref[...].astype(jnp.bfloat16)
    c = c_ref[...].astype(jnp.bfloat16)

    h0 = jnp.dot(z, w0z_ref[...], preferred_element_type=jnp.float32)
    h0 = h0 + jnp.dot(c, w0c_ref[...], preferred_element_type=jnp.float32)
    h0 = jnp.maximum(h0, 0.0)
    # Dropout(0.5) -> identity (eval mode).

    h1 = jnp.dot(h0.astype(jnp.bfloat16), w1_ref[...],
                 preferred_element_type=jnp.float32)
    h1 = jnp.maximum(h1, 0.0)

    out = jnp.dot(h1.astype(jnp.bfloat16), w2_ref[...],
                  preferred_element_type=jnp.float32)
    o_ref[...] = out.astype(o_ref.dtype)


def _round_up(x, m):
    return ((x + m - 1) // m) * m


def decoder_forward(z, c, w0, w1, w2, *, conditional=True, tb=256):
    """JAX wrapper reproducing Decoder.forward (eval mode).

    z  : [B, latent_size]          float32
    c  : [B, condition_dim]        float32 (ignored if conditional=False)
    w0 : [input_size, 512]         (PyTorch L0.weight transposed)
    w1 : [512, 512]                (PyTorch L1.weight transposed)
    w2 : [512, x_dim]              (PyTorch O.weight transposed)
    returns [B, x_dim] float32
    """
    batch, latent = z.shape
    hidden = w0.shape[1]
    x_dim = w2.shape[1]

    if conditional:
        cond_dim = c.shape[1]
        assert w0.shape[0] == latent + cond_dim
        w0z = w0[:latent, :]
        w0c = w0[latent:, :]
        c_in = c
    else:
        # Degenerate zero-width condition branch (contributes exactly 0).
        cond_dim = 8
        w0z = w0
        w0c = jnp.zeros((cond_dim, hidden), dtype=w0.dtype)
        c_in = jnp.zeros((batch, cond_dim), dtype=z.dtype)

    assert w1.shape == (hidden, hidden)
    assert w2.shape == (hidden, x_dim)

    # ---- padding for TPU-friendly layouts -------------------------------
    # Batch: pad to a multiple of 8 sublanes; tile with `tb` rows when large.
    b_pad = _round_up(batch, 8)
    if b_pad > tb:
        b_pad = _round_up(b_pad, tb)
        tb_eff = tb
    else:
        tb_eff = b_pad
    nb = b_pad // tb_eff

    # Output lane-dense: pad x_dim to a multiple of 128 (zero weight columns).
    x_pad = _round_up(x_dim, 128)

    z_p = jnp.pad(z, ((0, b_pad - batch), (0, 0)))
    c_p = jnp.pad(c_in, ((0, b_pad - batch), (0, 0)))
    w2_p = jnp.pad(w2, ((0, 0), (0, x_pad - x_dim)))

    # bf16 weights: halves HBM->VMEM weight traffic, native bf16 MXU rate.
    w0z_b = w0z.astype(jnp.bfloat16)
    w0c_b = w0c.astype(jnp.bfloat16)
    w1_b = w1.astype(jnp.bfloat16)
    w2_b = w2_p.astype(jnp.bfloat16)

    flops = 2 * b_pad * (latent * hidden + cond_dim * hidden
                         + hidden * hidden + hidden * x_pad)
    bytes_accessed = (w0z_b.size + w0c_b.size + w1_b.size + w2_b.size) * 2 \
        + (z_p.size + c_p.size) * 4 + b_pad * x_pad * 4

    out = pl.pallas_call(
        _decoder_kernel,
        out_shape=jax.ShapeDtypeStruct((b_pad, x_pad), jnp.float32),
        grid=(nb,),
        in_specs=[
            # Activations: tiled along batch.
            pl.BlockSpec((tb_eff, latent), lambda i: (i, 0)),
            pl.BlockSpec((tb_eff, cond_dim), lambda i: (i, 0)),
            # Weights: full-array blocks, constant index_map -> VMEM-resident
            # across the batch grid.
            pl.BlockSpec((latent, hidden), lambda i: (0, 0)),
            pl.BlockSpec((cond_dim, hidden), lambda i: (0, 0)),
            pl.BlockSpec((hidden, hidden), lambda i: (0, 0)),
            pl.BlockSpec((hidden, x_pad), lambda i: (0, 0)),
        ],
        out_specs=pl.BlockSpec((tb_eff, x_pad), lambda i: (i, 0)),
        compiler_params=pltpu.CompilerParams(
            dimension_semantics=("parallel",)),
        cost_estimate=pl.CostEstimate(
            flops=flops, transcendentals=0, bytes_accessed=bytes_accessed),
    )(z_p, c_p, w0z_b, w0c_b, w1_b, w2_b)

    return out[:batch, :x_dim]


def _reference_forward(z, c, w0, w1, w2, conditional=True):
    zc = jnp.concatenate([z, c], axis=-1) if conditional else z
    h0 = jnp.maximum(zc @ w0, 0.0)
    h1 = jnp.maximum(h0 @ w1, 0.0)
    return h1 @ w2


if __name__ == "__main__":
    # Module hyper-parameters (small, consistent with the PyTorch __init__).
    latent_size = 16
    condition_dim = 16
    x_dim = 32
    hidden = 512
    conditional = True
    input_size = latent_size + condition_dim if conditional else latent_size

    batch = 8

    key = jax.random.PRNGKey(0)
    k_z, k_c, k_w0, k_w1, k_w2 = jax.random.split(key, 5)

    z = jax.random.normal(k_z, (batch, latent_size), dtype=jnp.float32)
    c = jax.random.normal(k_c, (batch, condition_dim), dtype=jnp.float32)

    # Deterministic synthetic weights; stored as [in, out] (PyTorch stores
    # nn.Linear.weight as [out, in] and computes x @ W^T — same math).
    w0 = jax.random.normal(k_w0, (input_size, hidden), dtype=jnp.float32) * 0.05
    w1 = jax.random.normal(k_w1, (hidden, hidden), dtype=jnp.float32) * 0.05
    w2 = jax.random.normal(k_w2, (hidden, x_dim), dtype=jnp.float32) * 0.05

    fwd = jax.jit(functools.partial(decoder_forward, conditional=conditional))
    out = fwd(z, c, w0, w1, w2)
    out = jax.block_until_ready(out)

    ref = _reference_forward(z, c, w0, w1, w2, conditional=conditional)
    assert out.shape == (batch, x_dim)
    # bf16 weights/activations in the kernel vs. f32 reference -> loosen tol.
    assert jnp.allclose(out, ref, atol=5e-2, rtol=5e-2), (
        "mismatch vs reference; max abs diff = %s"
        % float(jnp.max(jnp.abs(out - ref))))

    print("KERNEL_OK")
</pallas_src>

<mosaic_0001>
module attributes {stable_mosaic.version = 11 : i64} {
  func.func @_decoder_kernel(%arg0: i32, %arg1: memref<8x16xf32, #tpu.memory_space<vmem>>, %arg2: memref<8x16xf32, #tpu.memory_space<vmem>>, %arg3: memref<16x512xbf16, #tpu.memory_space<vmem>>, %arg4: memref<16x512xbf16, #tpu.memory_space<vmem>>, %arg5: memref<512x512xbf16, #tpu.memory_space<vmem>>, %arg6: memref<512x128xbf16, #tpu.memory_space<vmem>>, %arg7: memref<8x128xf32, #tpu.memory_space<vmem>>) attributes {dimension_semantics = [#tpu.dimension_semantics<parallel>], iteration_bounds = array<i64: 1>, scalar_prefetch = 0 : i64, scratch_operands = 0 : i64, tpu.core_type = #tpu.core_type<tc>, window_params = [{transform_indices = @transform_0, window_bounds = array<i64: 8, 16>}, {transform_indices = @transform_1, window_bounds = array<i64: 8, 16>}, {pipeline_mode = #tpu.pipeline_mode<synchronous>, transform_indices = @transform_2, window_bounds = array<i64: 16, 512>}, {pipeline_mode = #tpu.pipeline_mode<synchronous>, transform_indices = @transform_3, window_bounds = array<i64: 16, 512>}, {pipeline_mode = #tpu.pipeline_mode<synchronous>, transform_indices = @transform_4, window_bounds = array<i64: 512, 512>}, {pipeline_mode = #tpu.pipeline_mode<synchronous>, transform_indices = @transform_5, window_bounds = array<i64: 512, 128>}, {transform_indices = @transform_6, window_bounds = array<i64: 8, 128>}]} {
    %c0 = arith.constant 0 : index
    %c0_0 = arith.constant 0 : index
    %0 = vector.load %arg1[%c0, %c0_0] : memref<8x16xf32, #tpu.memory_space<vmem>>, vector<8x16xf32>
    %1 = arith.truncf %0 : vector<8x16xf32> to vector<8x16xbf16>
    %c0_1 = arith.constant 0 : index
    %c0_2 = arith.constant 0 : index
    %2 = vector.load %arg2[%c0_1, %c0_2] : memref<8x16xf32, #tpu.memory_space<vmem>>, vector<8x16xf32>
    %3 = arith.truncf %2 : vector<8x16xf32> to vector<8x16xbf16>
    %c0_3 = arith.constant 0 : index
    %c0_4 = arith.constant 0 : index
    %4 = vector.load %arg3[%c0_3, %c0_4] : memref<16x512xbf16, #tpu.memory_space<vmem>>, vector<16x512xbf16>
    %cst = arith.constant dense<0.000000e+00> : vector<8x512xf32>
    %5 = tpu.matmul %1, %4, %cst {dimension_numbers = #tpu.dot_dimension_numbers<[1], [0], [0], [1], [0, 0, 1, 1], [], []>} : vector<8x16xbf16>, vector<16x512xbf16>, vector<8x512xf32> -> vector<8x512xf32>
    %c0_5 = arith.constant 0 : index
    %c0_6 = arith.constant 0 : index
    %6 = vector.load %arg4[%c0_5, %c0_6] : memref<16x512xbf16, #tpu.memory_space<vmem>>, vector<16x512xbf16>
    %cst_7 = arith.constant dense<0.000000e+00> : vector<8x512xf32>
    %7 = tpu.matmul %3, %6, %cst_7 {dimension_numbers = #tpu.dot_dimension_numbers<[1], [0], [0], [1], [0, 0, 1, 1], [], []>} : vector<8x16xbf16>, vector<16x512xbf16>, vector<8x512xf32> -> vector<8x512xf32>
    %8 = arith.addf %5, %7 : vector<8x512xf32>
    %cst_8 = arith.constant 0.000000e+00 : f32
    %9 = vector.broadcast %cst_8 : f32 to vector<8x512xf32>
    %10 = arith.maximumf %8, %9 : vector<8x512xf32>
    %11 = arith.truncf %10 : vector<8x512xf32> to vector<8x512xbf16>
    %c0_9 = arith.constant 0 : index
    %c0_10 = arith.constant 0 : index
    %12 = vector.load %arg5[%c0_9, %c0_10] : memref<512x512xbf16, #tpu.memory_space<vmem>>, vector<512x512xbf16>
    %cst_11 = arith.constant dense<0.000000e+00> : vector<8x512xf32>
    %13 = tpu.matmul %11, %12, %cst_11 {dimension_numbers = #tpu.dot_dimension_numbers<[1], [0], [0], [1], [0, 0, 1, 1], [], []>} : vector<8x512xbf16>, vector<512x512xbf16>, vector<8x512xf32> -> vector<8x512xf32>
    %cst_12 = arith.constant 0.000000e+00 : f32
    %14 = vector.broadcast %cst_12 : f32 to vector<8x512xf32>
    %15 = arith.maximumf %13, %14 : vector<8x512xf32>
    %16 = arith.truncf %15 : vector<8x512xf32> to vector<8x512xbf16>
    %c0_13 = arith.constant 0 : index
    %c0_14 = arith.constant 0 : index
    %17 = vector.load %arg6[%c0_13, %c0_14] : memref<512x128xbf16, #tpu.memory_space<vmem>>, vector<512x128xbf16>
    %cst_15 = arith.constant dense<0.000000e+00> : vector<8x128xf32>
    %18 = tpu.matmul %16, %17, %cst_15 {dimension_numbers = #tpu.dot_dimension_numbers<[1], [0], [0], [1], [0, 0, 1, 1], [], []>} : vector<8x512xbf16>, vector<512x128xbf16>, vector<8x128xf32> -> vector<8x128xf32>
    %c0_16 = arith.constant 0 : index
    %c0_17 = arith.constant 0 : index
    %19 = vector.load %arg7[%c0_16, %c0_17] : memref<8x128xf32, #tpu.memory_space<vmem>>, vector<8x128xf32>
    tpu.vector_store %arg7[%c0_16, %c0_17], %18 {strides = array<i32>} : memref<8x128xf32, #tpu.memory_space<vmem>>, vector<8x128xf32>,
    return
  }
  func.func @transform_0(%arg0: i32) -> (i32, i32) {
    %c0_i32 = arith.constant 0 : i32
    %c0_i32_0 = arith.constant 0 : i32
    return %arg0, %c0_i32 : i32, i32
  }
  func.func @transform_1(%arg0: i32) -> (i32, i32) {
    %c0_i32 = arith.constant 0 : i32
    %c0_i32_0 = arith.constant 0 : i32
    return %arg0, %c0_i32 : i32, i32
  }
  func.func @transform_2(%arg0: i32) -> (i32, i32) {
    %c0_i32 = arith.constant 0 : i32
    %c0_i32_0 = arith.constant 0 : i32
    %c0_i32_1 = arith.constant 0 : i32
    return %c0_i32, %c0_i32_0 : i32, i32
  }
  func.func @transform_3(%arg0: i32) -> (i32, i32) {
    %c0_i32 = arith.constant 0 : i32
    %c0_i32_0 = arith.constant 0 : i32
    %c0_i32_1 = arith.constant 0 : i32
    return %c0_i32, %c0_i32_0 : i32, i32
  }
  func.func @transform_4(%arg0: i32) -> (i32, i32) {
    %c0_i32 = arith.constant 0 : i32
    %c0_i32_0 = arith.constant 0 : i32
    %c0_i32_1 = arith.constant 0 : i32
    return %c0_i32, %c0_i32_0 : i32, i32
  }
  func.func @transform_5(%arg0: i32) -> (i32, i32) {
    %c0_i32 = arith.constant 0 : i32
    %c0_i32_0 = arith.constant 0 : i32
    %c0_i32_1 = arith.constant 0 : i32
    return %c0_i32, %c0_i32_0 : i32, i32
  }
  func.func @transform_6(%arg0: i32) -> (i32, i32) {
    %c0_i32 = arith.constant 0 : i32
    %c0_i32_0 = arith.constant 0 : i32
    return %arg0, %c0_i32 : i32, i32
  }
}

</mosaic_0001>

<llo_original>
// kernel: decoder_forward.1
$region0: #{decoder_forward.1}
  #allocation0 [shape = 'u32[]', space=smem, size = 0x4, offset = 0x4, fixed_abs, tag = 'smem constant byte address 0x4 - core index']
  #allocation1 [shape = 'u32[72,128]{1,0:T(1,128)}', space=vmem, size = 0x9000, scoped, tag = 'internal scratch']
  %s0 = inlined_call_operand.vmem [shape: f32[8,16], index: 0, kind: input, shape index: {}]
  %s1 = inlined_call_operand.vmem [shape: f32[8,16], index: 1, kind: input, shape index: {}]
  %s2 = inlined_call_operand.vmem [shape: bf16[16,512], index: 2, kind: input, shape index: {}]
  %s3 = inlined_call_operand.vmem [shape: bf16[16,512], index: 3, kind: input, shape index: {}]
  %s4 = inlined_call_operand.vmem [shape: bf16[512,512], index: 4, kind: input, shape index: {}]
  %s5 = inlined_call_operand.vmem [shape: bf16[512,128], index: 5, kind: input, shape index: {}]
  %s6 = inlined_call_operand.hbm [shape: f32[8,128], index: 6, kind: output, shape index: {}]
  %s7 = sld [smem:[#allocation0]]
  $region34: #{decoder_forward.1} parent=0
    _
  %s9 = ssub.s32 1, %s7
  %s10 = scalar_select 0, %s9, %s7
  $region1: #{decoder_forward.1} parent=0
    #allocation2 [shape = 'u8[4096]{0}', space=vmem, size = 0x1000, scoped, tag = 'output window, operand 0, single buffered']
    #allocation3 [shape = 's32[1]{0}', space=sflag, size = 0x4, scoped, tag = 'scoped memory for decoder_forward.1']
    %11 = vsyncpa [#allocation3], 0
    // Predicated region
    $region2: #{decoder_forward.1} parent=1 // pred_check
      _
    $region3: #{decoder_forward.1} parent=1 // pred_check_branch
      %13 = sbr.rel (0) target = $region5
    $region4: #{decoder_forward.1} parent=1 // pred_region
      _
    $region5: #{decoder_forward.1} parent=1 // pred_fallthru
      _
    // Predicated region
    $region6: #{decoder_forward.1} parent=1 // pred_check
      _
    $region7: #{decoder_forward.1} parent=1 // pred_check_branch
      %15 = sbr.rel (0) target = $region9
    $region8: #{decoder_forward.1} parent=1 // pred_region
      _
    $region9: #{decoder_forward.1} parent=1 // pred_fallthru
      _
    // Predicated region
    $region10: #{decoder_forward.1} parent=1 // pred_check
      _
    $region11: #{decoder_forward.1} parent=1 // pred_check_branch
      %17 = sbr.rel (0) target = $region13
    $region12: #{decoder_forward.1} parent=1 // pred_region
      _
    $region13: #{decoder_forward.1} parent=1 // pred_fallthru
      _
    // Predicated region
    $region14: #{decoder_forward.1} parent=1 // pred_check
      _
    $region15: #{decoder_forward.1} parent=1 // pred_check_branch
      %19 = sbr.rel (0) target = $region17
    $region16: #{decoder_forward.1} parent=1 // pred_region
      _
    $region17: #{decoder_forward.1} parent=1 // pred_fallthru
      _
    // Predicated region
    $region18: #{decoder_forward.1} parent=1 // pred_check
      _
    $region19: #{decoder_forward.1} parent=1 // pred_check_branch
      %21 = sbr.rel (0) target = $region21
    $region20: #{decoder_forward.1} parent=1 // pred_region
      _
    $region21: #{decoder_forward.1} parent=1 // pred_fallthru
      _
    // Predicated region
    $region22: #{decoder_forward.1} parent=1 // pred_check
      _
    $region23: #{decoder_forward.1} parent=1 // pred_check_branch
      %23 = sbr.rel (0) target = $region25
    $region24: #{decoder_forward.1} parent=1 // pred_region
      _
    $region25: #{decoder_forward.1} parent=1 // pred_fallthru
      _
    %v25 = vld [vmem:[%s0] sm:$0xff]
    %v26 = vpack.c.bf16 %v25, %v25
    %v27 = vld [vmem:[%s1] sm:$0xff]
    %v28 = vpack.c.bf16 %v27, %v27
    %v29 = vld [vmem:[%s2] sm:$0xff]
    %v30 = vld [vmem:[%s2 + $0x8] sm:$0xff]
    %v31 = vld [vmem:[%s2 + $0x10] sm:$0xff]
    %v32 = vld [vmem:[%s2 + $0x18] sm:$0xff]
    %v33 = vld [vmem:[%s3] sm:$0xff]
    %v34 = vld [vmem:[%s3 + $0x8] sm:$0xff]
    %v35 = vld [vmem:[%s3 + $0x10] sm:$0xff]
    %v36 = vld [vmem:[%s3 + $0x18] sm:$0xff]
    %v41 = vunpack.c.l.b16 %v33
    %v42 = vunpack.c.h.b16 %v33
    %v43 = vunpack.c.l.b16 %v34
    %v44 = vunpack.c.h.b16 %v34
    %v45 = vunpack.c.l.b16 %v35
    %v46 = vunpack.c.h.b16 %v35
    %v47 = vunpack.c.l.b16 %v36
    %v48 = vunpack.c.h.b16 %v36
    %v49 = vpack.c.b16 %v45, %v41
    %v50 = vpack.c.b16 %v46, %v42
    %v51 = vpack.c.b16 %v47, %v43
    %v52 = vpack.c.b16 %v48, %v44
    %vm57 = vcmask 130048
    %v59 = vsel %vm57, %v28, 0
    %61 = vmatpush.bf16.msra.mxu0 0
    %62 = vmatpush.bf16.msra.mxu0 0
    %63 = vmatpush.bf16.msra.mxu0 0
    %64 = vmatpush.bf16.msra.mxu0 0
    %65 = vmatpush.bf16.msra.mxu0 0
    %66 = vmatpush.bf16.msra.mxu0 0
    %67 = vmatpush.bf16.msra.mxu0 0
    %68 = vmatpush.bf16.msra.mxu0 %v49
    %69 = vmatmul.bf16.gmra.mxu0 %v59
    %v70 = vpop.f32.mrf.mxu0
    %v71 = vadd.f32 0.0, %v70
    %v72 = vpop.f32.mrf.mxu0
    %73 = vdwg.mxu0
    %74 = vmatpush.bf16.msra.mxu0 0
    %75 = vmatpush.bf16.msra.mxu0 0
    %76 = vmatpush.bf16.msra.mxu0 0
    %77 = vmatpush.bf16.msra.mxu0 0
    %78 = vmatpush.bf16.msra.mxu0 0
    %79 = vmatpush.bf16.msra.mxu0 0
    %80 = vmatpush.bf16.msra.mxu0 0
    %81 = vmatpush.bf16.msra.mxu0 %v50
    %82 = vmatmul.bf16.gmra.mxu0 %v59
    %v83 = vpop.f32.mrf.mxu0
    %v84 = vadd.f32 0.0, %v83
    %v85 = vpop.f32.mrf.mxu0
    %86 = vdwg.mxu0
    %87 = vmatpush.bf16.msra.mxu0 0
    %88 = vmatpush.bf16.msra.mxu0 0
    %89 = vmatpush.bf16.msra.mxu0 0
    %90 = vmatpush.bf16.msra.mxu0 0
    %91 = vmatpush.bf16.msra.mxu0 0
    %92 = vmatpush.bf16.msra.mxu0 0
    %93 = vmatpush.bf16.msra.mxu0 0
    %94 = vmatpush.bf16.msra.mxu0 %v51
    %95 = vmatmul.bf16.gmra.mxu0 %v59
    %v96 = vpop.f32.mrf.mxu0
    %v97 = vadd.f32 0.0, %v96
    %v98 = vpop.f32.mrf.mxu0
    %99 = vdwg.mxu0
    %100 = vmatpush.bf16.msra.mxu0 0
    %101 = vmatpush.bf16.msra.mxu0 0
    %102 = vmatpush.bf16.msra.mxu0 0
    %103 = vmatpush.bf16.msra.mxu0 0
    %104 = vmatpush.bf16.msra.mxu0 0
    %105 = vmatpush.bf16.msra.mxu0 0
    %106 = vmatpush.bf16.msra.mxu0 0
    %107 = vmatpush.bf16.msra.mxu0 %v52
    %108 = vmatmul.bf16.gmra.mxu0 %v59
    %v109 = vpop.f32.mrf.mxu0
    %v110 = vadd.f32 0.0, %v109
    %v111 = vpop.f32.mrf.mxu0
    %112 = vdwg.mxu0
    %v117 = vunpack.c.l.b16 %v29
    %v118 = vunpack.c.h.b16 %v29
    %v119 = vunpack.c.l.b16 %v30
    %v120 = vunpack.c.h.b16 %v30
    %v121 = vunpack.c.l.b16 %v31
    %v122 = vunpack.c.h.b16 %v31
    %v123 = vunpack.c.l.b16 %v32
    %v124 = vunpack.c.h.b16 %v32
    %v125 = vpack.c.b16 %v121, %v117
    %v126 = vpack.c.b16 %v122, %v118
    %v127 = vpack.c.b16 %v123, %v119
    %v128 = vpack.c.b16 %v124, %v120
    %v134 = vsel %vm57, %v26, 0
    %136 = vmatpush.bf16.msra.mxu0 0
    %137 = vmatpush.bf16.msra.mxu0 0
    %138 = vmatpush.bf16.msra.mxu0 0
    %139 = vmatpush.bf16.msra.mxu0 0
    %140 = vmatpush.bf16.msra.mxu0 0
    %141 = vmatpush.bf16.msra.mxu0 0
    %142 = vmatpush.bf16.msra.mxu0 0
    %143 = vmatpush.bf16.msra.mxu0 %v125
    %144 = vmatmul.bf16.gmra.mxu0 %v134
    %v145 = vpop.f32.mrf.mxu0
    %v146 = vadd.f32 %v71, %v145
    %v147 = vpop.f32.mrf.mxu0
    %148 = vdwg.mxu0
    %149 = vmatpush.bf16.msra.mxu0 0
    %150 = vmatpush.bf16.msra.mxu0 0
    %151 = vmatpush.bf16.msra.mxu0 0
    %152 = vmatpush.bf16.msra.mxu0 0
    %153 = vmatpush.bf16.msra.mxu0 0
    %154 = vmatpush.bf16.msra.mxu0 0
    %155 = vmatpush.bf16.msra.mxu0 0
    %156 = vmatpush.bf16.msra.mxu0 %v126
    %157 = vmatmul.bf16.gmra.mxu0 %v134
    %v158 = vpop.f32.mrf.mxu0
    %v159 = vadd.f32 %v84, %v158
    %v160 = vpop.f32.mrf.mxu0
    %161 = vdwg.mxu0
    %162 = vmatpush.bf16.msra.mxu0 0
    %163 = vmatpush.bf16.msra.mxu0 0
    %164 = vmatpush.bf16.msra.mxu0 0
    %165 = vmatpush.bf16.msra.mxu0 0
    %166 = vmatpush.bf16.msra.mxu0 0
    %167 = vmatpush.bf16.msra.mxu0 0
    %168 = vmatpush.bf16.msra.mxu0 0
    %169 = vmatpush.bf16.msra.mxu0 %v127
    %170 = vmatmul.bf16.gmra.mxu0 %v134
    %v171 = vpop.f32.mrf.mxu0
    %v172 = vadd.f32 %v97, %v171
    %v173 = vpop.f32.mrf.mxu0
    %174 = vdwg.mxu0
    %175 = vmatpush.bf16.msra.mxu0 0
    %176 = vmatpush.bf16.msra.mxu0 0
    %177 = vmatpush.bf16.msra.mxu0 0
    %178 = vmatpush.bf16.msra.mxu0 0
    %179 = vmatpush.bf16.msra.mxu0 0
    %180 = vmatpush.bf16.msra.mxu0 0
    %181 = vmatpush.bf16.msra.mxu0 0
    %182 = vmatpush.bf16.msra.mxu0 %v128
    %183 = vmatmul.bf16.gmra.mxu0 %v134
    %v184 = vpop.f32.mrf.mxu0
    %v185 = vadd.f32 %v110, %v184
    %v186 = vpop.f32.mrf.mxu0
    %187 = vdwg.mxu0
    %v188 = vmax.f32 %v146, 0.0
    %v189 = vmax.f32 %v159, 0.0
    %v190 = vmax.f32 %v172, 0.0
    %v191 = vmax.f32 %v185, 0.0
    %v192 = vpack.c.bf16 %v188, %v188
    %v193 = vpack.c.bf16 %v189, %v189
    %v194 = vpack.c.bf16 %v190, %v190
    %v195 = vpack.c.bf16 %v191, %v191
    %v196 = vld [vmem:[%s4] sm:$0xff]
    %v197 = vld [vmem:[%s4 + $0x8] sm:$0xff]
    %v198 = vld [vmem:[%s4 + $0x10] sm:$0xff]
    %v199 = vld [vmem:[%s4 + $0x18] sm:$0xff]
    %v200 = vld [vmem:[%s4 + $0x20] sm:$0xff]
    %v201 = vld [vmem:[%s4 + $0x28] sm:$0xff]
    %v202 = vld [vmem:[%s4 + $0x30] sm:$0xff]
    %v203 = vld [vmem:[%s4 + $0x38] sm:$0xff]
    %v204 = vld [vmem:[%s4 + $0x40] sm:$0xff]
    %v205 = vld [vmem:[%s4 + $0x48] sm:$0xff]
    %v206 = vld [vmem:[%s4 + $0x50] sm:$0xff]
    %v207 = vld [vmem:[%s4 + $0x58] sm:$0xff]
    %v208 = vld [vmem:[%s4 + $0x60] sm:$0xff]
    %v209 = vld [vmem:[%s4 + $0x68] sm:$0xff]
    %v210 = vld [vmem:[%s4 + $0x70] sm:$0xff]
    %v211 = vld [vmem:[%s4 + $0x78] sm:$0xff]
    %v212 = vld [vmem:[%s4 + $0x80] sm:$0xff]
    %v213 = vld [vmem:[%s4 + $0x88] sm:$0xff]
    %v214 = vld [vmem:[%s4 + $0x90] sm:$0xff]
    %v215 = vld [vmem:[%s4 + $0x98] sm:$0xff]
    %v216 = vld [vmem:[%s4 + $0xa0] sm:$0xff]
    %v217 = vld [vmem:[%s4 + $0xa8] sm:$0xff]
    %v218 = vld [vmem:[%s4 + $0xb0] sm:$0xff]
    %v219 = vld [vmem:[%s4 + $0xb8] sm:$0xff]
    %v220 = vld [vmem:[%s4 + $0xc0] sm:$0xff]
    %v221 = vld [vmem:[%s4 + $0xc8] sm:$0xff]
    %v222 = vld [vmem:[%s4 + $0xd0] sm:$0xff]
    %v223 = vld [vmem:[%s4 + $0xd8] sm:$0xff]
    %v224 = vld [vmem:[%s4 + $0xe0] sm:$0xff]
    %v225 = vld [vmem:[%s4 + $0xe8] sm:$0xff]
    %v226 = vld [vmem:[%s4 + $0xf0] sm:$0xff]
    %v227 = vld [vmem:[%s4 + $0xf8] sm:$0xff]
    %v228 = vld [vmem:[%s4 + $0x100] sm:$0xff]
    %v229 = vld [vmem:[%s4 + $0x108] sm:$0xff]
    %v230 = vld [vmem:[%s4 + $0x110] sm:$0xff]
    %v231 = vld [vmem:[%s4 + $0x118] sm:$0xff]
    %v232 = vld [vmem:[%s4 + $0x120] sm:$0xff]
    %v233 = vld [vmem:[%s4 + $0x128] sm:$0xff]
    %v234 = vld [vmem:[%s4 + $0x130] sm:$0xff]
    %v235 = vld [vmem:[%s4 + $0x138] sm:$0xff]
    %v236 = vld [vmem:[%s4 + $0x140] sm:$0xff]
    %v237 = vld [vmem:[%s4 + $0x148] sm:$0xff]
    %v238 = vld [vmem:[%s4 + $0x150] sm:$0xff]
    %v239 = vld [vmem:[%s4 + $0x158] sm:$0xff]
    %v240 = vld [vmem:[%s4 + $0x160] sm:$0xff]
    %v241 = vld [vmem:[%s4 + $0x168] sm:$0xff]
    %v242 = vld [vmem:[%s4 + $0x170] sm:$0xff]
    %v243 = vld [vmem:[%s4 + $0x178] sm:$0xff]
    %v244 = vld [vmem:[%s4 + $0x180] sm:$0xff]
    %v245 = vld [vmem:[%s4 + $0x188] sm:$0xff]
    %v246 = vld [vmem:[%s4 + $0x190] sm:$0xff]
    %v247 = vld [vmem:[%s4 + $0x198] sm:$0xff]
    %v248 = vld [vmem:[%s4 + $0x1a0] sm:$0xff]
    %v249 = vld [vmem:[%s4 + $0x1a8] sm:$0xff]
    %v250 = vld [vmem:[%s4 + $0x1b0] sm:$0xff]
    %v251 = vld [vmem:[%s4 + $0x1b8] sm:$0xff]
    %v252 = vld [vmem:[%s4 + $0x1c0] sm:$0xff]
    %v253 = vld [vmem:[%s4 + $0x1c8] sm:$0xff]
    %v254 = vld [vmem:[%s4 + $0x1d0] sm:$0xff]
    %v255 = vld [vmem:[%s4 + $0x1d8] sm:$0xff]
    %v256 = vld [vmem:[%s4 + $0x1e0] sm:$0xff]
    %v257 = vld [vmem:[%s4 + $0x1e8] sm:$0xff]
    %v258 = vld [vmem:[%s4 + $0x1f0] sm:$0xff]
    %v259 = vld [vmem:[%s4 + $0x1f8] sm:$0xff]
    %v260 = vld [vmem:[%s4 + $0x200] sm:$0xff]
    %v261 = vld [vmem:[%s4 + $0x208] sm:$0xff]
    %v262 = vld [vmem:[%s4 + $0x210] sm:$0xff]
    %v263 = vld [vmem:[%s4 + $0x218] sm:$0xff]
    %v264 = vld [vmem:[%s4 + $0x220] sm:$0xff]
    %v265 = vld [vmem:[%s4 + $0x228] sm:$0xff]
    %v266 = vld [vmem:[%s4 + $0x230] sm:$0xff]
    %v267 = vld [vmem:[%s4 + $0x238] sm:$0xff]
    %v268 = vld [vmem:[%s4 + $0x240] sm:$0xff]
    %v269 = vld [vmem:[%s4 + $0x248] sm:$0xff]
    %v270 = vld [vmem:[%s4 + $0x250] sm:$0xff]
    %v271 = vld [vmem:[%s4 + $0x258] sm:$0xff]
    %v272 = vld [vmem:[%s4 + $0x260] sm:$0xff]
    %v273 = vld [vmem:[%s4 + $0x268] sm:$0xff]
    %v274 = vld [vmem:[%s4 + $0x270] sm:$0xff]
    %v275 = vld [vmem:[%s4 + $0x278] sm:$0xff]
    %v276 = vld [vmem:[%s4 + $0x280] sm:$0xff]
    %v277 = vld [vmem:[%s4 + $0x288] sm:$0xff]
    %v278 = vld [vmem:[%s4 + $0x290] sm:$0xff]
    %v279 = vld [vmem:[%s4 + $0x298] sm:$0xff]
    %v280 = vld [vmem:[%s4 + $0x2a0] sm:$0xff]
    %v281 = vld [vmem:[%s4 + $0x2a8] sm:$0xff]
    %v282 = vld [vmem:[%s4 + $0x2b0] sm:$0xff]
    %v283 = vld [vmem:[%s4 + $0x2b8] sm:$0xff]
    %v284 = vld [vmem:[%s4 + $0x2c0] sm:$0xff]
    %v285 = vld [vmem:[%s4 + $0x2c8] sm:$0xff]
    %v286 = vld [vmem:[%s4 + $0x2d0] sm:$0xff]
    %v287 = vld [vmem:[%s4 + $0x2d8] sm:$0xff]
    %v288 = vld [vmem:[%s4 + $0x2e0] sm:$0xff]
    %v289 = vld [vmem:[%s4 + $0x2e8] sm:$0xff]
    %v290 = vld [vmem:[%s4 + $0x2f0] sm:$0xff]
    %v291 = vld [vmem:[%s4 + $0x2f8] sm:$0xff]
    %v292 = vld [vmem:[%s4 + $0x300] sm:$0xff]
    %v293 = vld [vmem:[%s4 + $0x308] sm:$0xff]
    %v294 = vld [vmem:[%s4 + $0x310] sm:$0xff]
    %v295 = vld [vmem:[%s4 + $0x318] sm:$0xff]
    %v296 = vld [vmem:[%s4 + $0x320] sm:$0xff]
    %v297 = vld [vmem:[%s4 + $0x328] sm:$0xff]
    %v298 = vld [vmem:[%s4 + $0x330] sm:$0xff]
    %v299 = vld [vmem:[%s4 + $0x338] sm:$0xff]
    %v300 = vld [vmem:[%s4 + $0x340] sm:$0xff]
    %v301 = vld [vmem:[%s4 + $0x348] sm:$0xff]
    %v302 = vld [vmem:[%s4 + $0x350] sm:$0xff]
    %v303 = vld [vmem:[%s4 + $0x358] sm:$0xff]
    %v304 = vld [vmem:[%s4 + $0x360] sm:$0xff]
    %v305 = vld [vmem:[%s4 + $0x368] sm:$0xff]
    %v306 = vld [vmem:[%s4 + $0x370] sm:$0xff]
    %v307 = vld [vmem:[%s4 + $0x378] sm:$0xff]
    %v308 = vld [vmem:[%s4 + $0x380] sm:$0xff]
    %v309 = vld [vmem:[%s4 + $0x388] sm:$0xff]
    %v310 = vld [vmem:[%s4 + $0x390] sm:$0xff]
    %v311 = vld [vmem:[%s4 + $0x398] sm:$0xff]
    %v312 = vld [vmem:[%s4 + $0x3a0] sm:$0xff]
    %v313 = vld [vmem:[%s4 + $0x3a8] sm:$0xff]
    %v314 = vld [vmem:[%s4 + $0x3b0] sm:$0xff]
    %v315 = vld [vmem:[%s4 + $0x3b8] sm:$0xff]
    %v316 = vld [vmem:[%s4 + $0x3c0] sm:$0xff]
    %v317 = vld [vmem:[%s4 + $0x3c8] sm:$0xff]
    %v318 = vld [vmem:[%s4 + $0x3d0] sm:$0xff]
    %v319 = vld [vmem:[%s4 + $0x3d8] sm:$0xff]
    %v320 = vld [vmem:[%s4 + $0x3e0] sm:$0xff]
    %v321 = vld [vmem:[%s4 + $0x3e8] sm:$0xff]
    %v322 = vld [vmem:[%s4 + $0x3f0] sm:$0xff]
    %v323 = vld [vmem:[%s4 + $0x3f8] sm:$0xff]
    %v452 = vunpack.c.l.b16 %v196
    %v453 = vunpack.c.h.b16 %v196
    %v454 = vunpack.c.l.b16 %v197
    %v455 = vunpack.c.h.b16 %v197
    %v456 = vunpack.c.l.b16 %v198
    %v457 = vunpack.c.h.b16 %v198
    %v458 = vunpack.c.l.b16 %v199
    %v459 = vunpack.c.h.b16 %v199
    %v460 = vunpack.c.l.b16 %v200
    %v461 = vunpack.c.h.b16 %v200
    %v462 = vunpack.c.l.b16 %v201
    %v463 = vunpack.c.h.b16 %v201
    %v464 = vunpack.c.l.b16 %v202
    %v465 = vunpack.c.h.b16 %v202
    %v466 = vunpack.c.l.b16 %v203
    %v467 = vunpack.c.h.b16 %v203
    %v468 = vunpack.c.l.b16 %v204
    %v469 = vunpack.c.h.b16 %v204
    %v470 = vunpack.c.l.b16 %v205
    %v471 = vunpack.c.h.b16 %v205
    %v472 = vunpack.c.l.b16 %v206
    %v473 = vunpack.c.h.b16 %v206
    %v474 = vunpack.c.l.b16 %v207
    %v475 = vunpack.c.h.b16 %v207
    %v476 = vunpack.c.l.b16 %v208
    %v477 = vunpack.c.h.b16 %v208
    %v478 = vunpack.c.l.b16 %v209
    %v479 = vunpack.c.h.b16 %v209
    %v480 = vunpack.c.l.b16 %v210
    %v481 = vunpack.c.h.b16 %v210
    %v482 = vunpack.c.l.b16 %v211
    %v483 = vunpack.c.h.b16 %v211
    %v484 = vunpack.c.l.b16 %v212
    %v485 = vunpack.c.h.b16 %v212
    %v486 = vunpack.c.l.b16 %v213
    %v487 = vunpack.c.h.b16 %v213
    %v488 = vunpack.c.l.b16 %v214
    %v489 = vunpack.c.h.b16 %v214
    %v490 = vunpack.c.l.b16 %v215
    %v491 = vunpack.c.h.b16 %v215
    %v492 = vunpack.c.l.b16 %v216
    %v493 = vunpack.c.h.b16 %v216
    %v494 = vunpack.c.l.b16 %v217
    %v495 = vunpack.c.h.b16 %v217
    %v496 = vunpack.c.l.b16 %v218
    %v497 = vunpack.c.h.b16 %v218
    %v498 = vunpack.c.l.b16 %v219
    %v499 = vunpack.c.h.b16 %v219
    %v500 = vunpack.c.l.b16 %v220
    %v501 = vunpack.c.h.b16 %v220
    %v502 = vunpack.c.l.b16 %v221
    %v503 = vunpack.c.h.b16 %v221
    %v504 = vunpack.c.l.b16 %v222
    %v505 = vunpack.c.h.b16 %v222
    %v506 = vunpack.c.l.b16 %v223
    %v507 = vunpack.c.h.b16 %v223
    %v508 = vunpack.c.l.b16 %v224
    %v509 = vunpack.c.h.b16 %v224
    %v510 = vunpack.c.l.b16 %v225
    %v511 = vunpack.c.h.b16 %v225
    %v512 = vunpack.c.l.b16 %v226
    %v513 = vunpack.c.h.b16 %v226
    %v514 = vunpack.c.l.b16 %v227
    %v515 = vunpack.c.h.b16 %v227
    %v516 = vunpack.c.l.b16 %v228
    %v517 = vunpack.c.h.b16 %v228
    %v518 = vunpack.c.l.b16 %v229
    %v519 = vunpack.c.h.b16 %v229
    %v520 = vunpack.c.l.b16 %v230
    %v521 = vunpack.c.h.b16 %v230
    %v522 = vunpack.c.l.b16 %v231
    %v523 = vunpack.c.h.b16 %v231
    %v524 = vunpack.c.l.b16 %v232
    %v525 = vunpack.c.h.b16 %v232
    %v526 = vunpack.c.l.b16 %v233
    %v527 = vunpack.c.h.b16 %v233
    %v528 = vunpack.c.l.b16 %v234
    %v529 = vunpack.c.h.b16 %v234
    %v530 = vunpack.c.l.b16 %v235
    %v531 = vunpack.c.h.b16 %v235
    %v532 = vunpack.c.l.b16 %v236
    %v533 = vunpack.c.h.b16 %v236
    %v534 = vunpack.c.l.b16 %v237
    %v535 = vunpack.c.h.b16 %v237
    %v536 = vunpack.c.l.b16 %v238
    %v537 = vunpack.c.h.b16 %v238
    %v538 = vunpack.c.l.b16 %v239
    %v539 = vunpack.c.h.b16 %v239
    %v540 = vunpack.c.l.b16 %v240
    %v541 = vunpack.c.h.b16 %v240
    %v542 = vunpack.c.l.b16 %v241
    %v543 = vunpack.c.h.b16 %v241
    %v544 = vunpack.c.l.b16 %v242
    %v545 = vunpack.c.h.b16 %v242
    %v546 = vunpack.c.l.b16 %v243
    %v547 = vunpack.c.h.b16 %v243
    %v548 = vunpack.c.l.b16 %v244
    %v549 = vunpack.c.h.b16 %v244
    %v550 = vunpack.c.l.b16 %v245
    %v551 = vunpack.c.h.b16 %v245
    %v552 = vunpack.c.l.b16 %v246
    %v553 = vunpack.c.h.b16 %v246
    %v554 = vunpack.c.l.b16 %v247
    %v555 = vunpack.c.h.b16 %v247
    %v556 = vunpack.c.l.b16 %v248
    %v557 = vunpack.c.h.b16 %v248
    %v558 = vunpack.c.l.b16 %v249
    %v559 = vunpack.c.h.b16 %v249
    %v560 = vunpack.c.l.b16 %v250
    %v561 = vunpack.c.h.b16 %v250
    %v562 = vunpack.c.l.b16 %v251
    %v563 = vunpack.c.h.b16 %v251
    %v564 = vunpack.c.l.b16 %v252
    %v565 = vunpack.c.h.b16 %v252
    %v566 = vunpack.c.l.b16 %v253
    %v567 = vunpack.c.h.b16 %v253
    %v568 = vunpack.c.l.b16 %v254
    %v569 = vunpack.c.h.b16 %v254
    %v570 = vunpack.c.l.b16 %v255
    %v571 = vunpack.c.h.b16 %v255
    %v572 = vunpack.c.l.b16 %v256
    %v573 = vunpack.c.h.b16 %v256
    %v574 = vunpack.c.l.b16 %v257
    %v575 = vunpack.c.h.b16 %v257
    %v576 = vunpack.c.l.b16 %v258
    %v577 = vunpack.c.h.b16 %v258
    %v578 = vunpack.c.l.b16 %v259
    %v579 = vunpack.c.h.b16 %v259
    %v580 = vunpack.c.l.b16 %v260
    %v581 = vunpack.c.h.b16 %v260
    %v582 = vunpack.c.l.b16 %v261
    %v583 = vunpack.c.h.b16 %v261
    %v584 = vunpack.c.l.b16 %v262
    %v585 = vunpack.c.h.b16 %v262
    %v586 = vunpack.c.l.b16 %v263
    %v587 = vunpack.c.h.b16 %v263
    %v588 = vunpack.c.l.b16 %v264
    %v589 = vunpack.c.h.b16 %v264
    %v590 = vunpack.c.l.b16 %v265
    %v591 = vunpack.c.h.b16 %v265
    %v592 = vunpack.c.l.b16 %v266
    %v593 = vunpack.c.h.b16 %v266
    %v594 = vunpack.c.l.b16 %v267
    %v595 = vunpack.c.h.b16 %v267
    %v596 = vunpack.c.l.b16 %v268
    %v597 = vunpack.c.h.b16 %v268
    %v598 = vunpack.c.l.b16 %v269
    %v599 = vunpack.c.h.b16 %v269
    %v600 = vunpack.c.l.b16 %v270
    %v601 = vunpack.c.h.b16 %v270
    %v602 = vunpack.c.l.b16 %v271
    %v603 = vunpack.c.h.b16 %v271
    %v604 = vunpack.c.l.b16 %v272
    %v605 = vunpack.c.h.b16 %v272
    %v606 = vunpack.c.l.b16 %v273
    %v607 = vunpack.c.h.b16 %v273
    %v608 = vunpack.c.l.b16 %v274
    %v609 = vunpack.c.h.b16 %v274
    %v610 = vunpack.c.l.b16 %v275
    %v611 = vunpack.c.h.b16 %v275
    %v612 = vunpack.c.l.b16 %v276
    %v613 = vunpack.c.h.b16 %v276
    %v614 = vunpack.c.l.b16 %v277
    %v615 = vunpack.c.h.b16 %v277
    %v616 = vunpack.c.l.b16 %v278
    %v617 = vunpack.c.h.b16 %v278
    %v618 = vunpack.c.l.b16 %v279
    %v619 = vunpack.c.h.b16 %v279
    %v620 = vunpack.c.l.b16 %v280
    %v621 = vunpack.c.h.b16 %v280
    %v622 = vunpack.c.l.b16 %v281
    %v623 = vunpack.c.h.b16 %v281
    %v624 = vunpack.c.l.b16 %v282
    %v625 = vunpack.c.h.b16 %v282
    %v626 = vunpack.c.l.b16 %v283
    %v627 = vunpack.c.h.b16 %v283
    %v628 = vunpack.c.l.b16 %v284
    %v629 = vunpack.c.h.b16 %v284
    %v630 = vunpack.c.l.b16 %v285
    %v631 = vunpack.c.h.b16 %v285
    %v632 = vunpack.c.l.b16 %v286
    %v633 = vunpack.c.h.b16 %v286
    %v634 = vunpack.c.l.b16 %v287
    %v635 = vunpack.c.h.b16 %v287
    %v636 = vunpack.c.l.b16 %v288
    %v637 = vunpack.c.h.b16 %v288
    %v638 = vunpack.c.l.b16 %v289
    %v639 = vunpack.c.h.b16 %v289
    %v640 = vunpack.c.l.b16 %v290
    %v641 = vunpack.c.h.b16 %v290
    %v642 = vunpack.c.l.b16 %v291
    %v643 = vunpack.c.h.b16 %v291
    %v644 = vunpack.c.l.b16 %v292
    %v645 = vunpack.c.h.b16 %v292
    %v646 = vunpack.c.l.b16 %v293
    %v647 = vunpack.c.h.b16 %v293
    %v648 = vunpack.c.l.b16 %v294
    %v649 = vunpack.c.h.b16 %v294
    %v650 = vunpack.c.l.b16 %v295
    %v651 = vunpack.c.h.b16 %v295
    %v652 = vunpack.c.l.b16 %v296
    %v653 = vunpack.c.h.b16 %v296
    %v654 = vunpack.c.l.b16 %v297
    %v655 = vunpack.c.h.b16 %v297
    %v656 = vunpack.c.l.b16 %v298
    %v657 = vunpack.c.h.b16 %v298
    %v658 = vunpack.c.l.b16 %v299
    %v659 = vunpack.c.h.b16 %v299
    %v660 = vunpack.c.l.b16 %v300
    %v661 = vunpack.c.h.b16 %v300
    %v662 = vunpack.c.l.b16 %v301
    %v663 = vunpack.c.h.b16 %v301
    %v664 = vunpack.c.l.b16 %v302
    %v665 = vunpack.c.h.b16 %v302
    %v666 = vunpack.c.l.b16 %v303
    %v667 = vunpack.c.h.b16 %v303
    %v668 = vunpack.c.l.b16 %v304
    %v669 = vunpack.c.h.b16 %v304
    %v670 = vunpack.c.l.b16 %v305
    %v671 = vunpack.c.h.b16 %v305
    %v672 = vunpack.c.l.b16 %v306
    %v673 = vunpack.c.h.b16 %v306
    %v674 = vunpack.c.l.b16 %v307
    %v675 = vunpack.c.h.b16 %v307
    %v676 = vunpack.c.l.b16 %v308
    %v677 = vunpack.c.h.b16 %v308
    %v678 = vunpack.c.l.b16 %v309
    %v679 = vunpack.c.h.b16 %v309
    %v680 = vunpack.c.l.b16 %v310
    %v681 = vunpack.c.h.b16 %v310
    %v682 = vunpack.c.l.b16 %v311
    %v683 = vunpack.c.h.b16 %v311
    %v684 = vunpack.c.l.b16 %v312
    %v685 = vunpack.c.h.b16 %v312
    %v686 = vunpack.c.l.b16 %v313
    %v687 = vunpack.c.h.b16 %v313
    %v688 = vunpack.c.l.b16 %v314
    %v689 = vunpack.c.h.b16 %v314
    %v690 = vunpack.c.l.b16 %v315
    %v691 = vunpack.c.h.b16 %v315
    %v692 = vunpack.c.l.b16 %v316
    %v693 = vunpack.c.h.b16 %v316
    %v694 = vunpack.c.l.b16 %v317
    %v695 = vunpack.c.h.b16 %v317
    %v696 = vunpack.c.l.b16 %v318
    %v697 = vunpack.c.h.b16 %v318
    %v698 = vunpack.c.l.b16 %v319
    %v699 = vunpack.c.h.b16 %v319
    %v700 = vunpack.c.l.b16 %v320
    %v701 = vunpack.c.h.b16 %v320
    %v702 = vunpack.c.l.b16 %v321
    %v703 = vunpack.c.h.b16 %v321
    %v704 = vunpack.c.l.b16 %v322
    %v705 = vunpack.c.h.b16 %v322
    %v706 = vunpack.c.l.b16 %v323
    %v707 = vunpack.c.h.b16 %v323
    %v708 = vpack.c.b16 %v456, %v452
    %v709 = vpack.c.b16 %v457, %v453
    %v710 = vpack.c.b16 %v458, %v454
    %v711 = vpack.c.b16 %v459, %v455
    %v712 = vpack.c.b16 %v464, %v460
    %v713 = vpack.c.b16 %v465, %v461
    %v714 = vpack.c.b16 %v466, %v462
    %v715 = vpack.c.b16 %v467, %v463
    %v716 = vpack.c.b16 %v472, %v468
    %v717 = vpack.c.b16 %v473, %v469
    %v718 = vpack.c.b16 %v474, %v470
    %v719 = vpack.c.b16 %v475, %v471
    %v720 = vpack.c.b16 %v480, %v476
    %v721 = vpack.c.b16 %v481, %v477
    %v722 = vpack.c.b16 %v482, %v478
    %v723 = vpack.c.b16 %v483, %v479
    %v724 = vpack.c.b16 %v488, %v484
    %v725 = vpack.c.b16 %v489, %v485
    %v726 = vpack.c.b16 %v490, %v486
    %v727 = vpack.c.b16 %v491, %v487
    %v728 = vpack.c.b16 %v496, %v492
    %v729 = vpack.c.b16 %v497, %v493
    %v730 = vpack.c.b16 %v498, %v494
    %v731 = vpack.c.b16 %v499, %v495
    %v732 = vpack.c.b16 %v504, %v500
    %v733 = vpack.c.b16 %v505, %v501
    %v734 = vpack.c.b16 %v506, %v502
    %v735 = vpack.c.b16 %v507, %v503
    %v736 = vpack.c.b16 %v512, %v508
    %v737 = vpack.c.b16 %v513, %v509
    %v738 = vpack.c.b16 %v514, %v510
    %v739 = vpack.c.b16 %v515, %v511
    %v740 = vpack.c.b16 %v520, %v516
    %v741 = vpack.c.b16 %v521, %v517
    %v742 = vpack.c.b16 %v522, %v518
    %v743 = vpack.c.b16 %v523, %v519
    %v744 = vpack.c.b16 %v528, %v524
    %v745 = vpack.c.b16 %v529, %v525
    %v746 = vpack.c.b16 %v530, %v526
    %v747 = vpack.c.b16 %v531, %v527
    %v748 = vpack.c.b16 %v536, %v532
    %v749 = vpack.c.b16 %v537, %v533
    %v750 = vpack.c.b16 %v538, %v534
    %v751 = vpack.c.b16 %v539, %v535
    %v752 = vpack.c.b16 %v544, %v540
    %v753 = vpack.c.b16 %v545, %v541
    %v754 = vpack.c.b16 %v546, %v542
    %v755 = vpack.c.b16 %v547, %v543
    %v756 = vpack.c.b16 %v552, %v548
    %v757 = vpack.c.b16 %v553, %v549
    %v758 = vpack.c.b16 %v554, %v550
    %v759 = vpack.c.b16 %v555, %v551
    %v760 = vpack.c.b16 %v560, %v556
    %v761 = vpack.c.b16 %v561, %v557
    %v762 = vpack.c.b16 %v562, %v558
    %v763 = vpack.c.b16 %v563, %v559
    %v764 = vpack.c.b16 %v568, %v564
    %v765 = vpack.c.b16 %v569, %v565
    %v766 = vpack.c.b16 %v570, %v566
    %v767 = vpack.c.b16 %v571, %v567
    %v768 = vpack.c.b16 %v576, %v572
    %v769 = vpack.c.b16 %v577, %v573
    %v770 = vpack.c.b16 %v578, %v574
    %v771 = vpack.c.b16 %v579, %v575
    %v772 = vpack.c.b16 %v584, %v580
    %v773 = vpack.c.b16 %v585, %v581
    %v774 = vpack.c.b16 %v586, %v582
    %v775 = vpack.c.b16 %v587, %v583
    %v776 = vpack.c.b16 %v592, %v588
    %v777 = vpack.c.b16 %v593, %v589
    %v778 = vpack.c.b16 %v594, %v590
    %v779 = vpack.c.b16 %v595, %v591
    %v780 = vpack.c.b16 %v600, %v596
    %v781 = vpack.c.b16 %v601, %v597
    %v782 = vpack.c.b16 %v602, %v598
    %v783 = vpack.c.b16 %v603, %v599
    %v784 = vpack.c.b16 %v608, %v604
    %v785 = vpack.c.b16 %v609, %v605
    %v786 = vpack.c.b16 %v610, %v606
    %v787 = vpack.c.b16 %v611, %v607
    %v788 = vpack.c.b16 %v616, %v612
    %v789 = vpack.c.b16 %v617, %v613
    %v790 = vpack.c.b16 %v618, %v614
    %v791 = vpack.c.b16 %v619, %v615
    %v792 = vpack.c.b16 %v624, %v620
    %v793 = vpack.c.b16 %v625, %v621
    %v794 = vpack.c.b16 %v626, %v622
    %v795 = vpack.c.b16 %v627, %v623
    %v796 = vpack.c.b16 %v632, %v628
    %v797 = vpack.c.b16 %v633, %v629
    %v798 = vpack.c.b16 %v634, %v630
    %v799 = vpack.c.b16 %v635, %v631
    %v800 = vpack.c.b16 %v640, %v636
    %v801 = vpack.c.b16 %v641, %v637
    %v802 = vpack.c.b16 %v642, %v638
    %v803 = vpack.c.b16 %v643, %v639
    %v804 = vpack.c.b16 %v648, %v644
    %v805 = vpack.c.b16 %v649, %v645
    %v806 = vpack.c.b16 %v650, %v646
    %v807 = vpack.c.b16 %v651, %v647
    %v808 = vpack.c.b16 %v656, %v652
    %v809 = vpack.c.b16 %v657, %v653
    %v810 = vpack.c.b16 %v658, %v654
    %v811 = vpack.c.b16 %v659, %v655
    %v812 = vpack.c.b16 %v664, %v660
    %v813 = vpack.c.b16 %v665, %v661
    %v814 = vpack.c.b16 %v666, %v662
    %v815 = vpack.c.b16 %v667, %v663
    %v816 = vpack.c.b16 %v672, %v668
    %v817 = vpack.c.b16 %v673, %v669
    %v818 = vpack.c.b16 %v674, %v670
    %v819 = vpack.c.b16 %v675, %v671
    %v820 = vpack.c.b16 %v680, %v676
    %v821 = vpack.c.b16 %v681, %v677
    %v822 = vpack.c.b16 %v682, %v678
    %v823 = vpack.c.b16 %v683, %v679
    %v824 = vpack.c.b16 %v688, %v684
    %v825 = vpack.c.b16 %v689, %v685
    %v826 = vpack.c.b16 %v690, %v686
    %v827 = vpack.c.b16 %v691, %v687
    %v828 = vpack.c.b16 %v696, %v692
    %v829 = vpack.c.b16 %v697, %v693
    %v830 = vpack.c.b16 %v698, %v694
    %v831 = vpack.c.b16 %v699, %v695
    %v832 = vpack.c.b16 %v704, %v700
    %v833 = vpack.c.b16 %v705, %v701
    %v834 = vpack.c.b16 %v706, %v702
    %v835 = vpack.c.b16 %v707, %v703
    %964 = vmatpush.bf16.msra.mxu0 %v736
    %965 = vmatpush.bf16.msra.mxu0 %v732
    %966 = vmatpush.bf16.msra.mxu0 %v728
    %967 = vmatpush.bf16.msra.mxu0 %v724
    %968 = vmatpush.bf16.msra.mxu0 %v720
    %969 = vmatpush.bf16.msra.mxu0 %v716
    %970 = vmatpush.bf16.msra.mxu0 %v712
    %971 = vmatpush.bf16.msra.mxu0 %v708
    %972 = vmatmul.bf16.gmra.mxu0 %v192
    %v973 = vpop.f32.mrf.mxu0
    %v974 = vadd.f32 0.0, %v973
    %v975 = vpop.f32.mrf.mxu0
    %976 = vdwg.mxu0
    %977 = vmatpush.bf16.msra.mxu0 %v768
    %978 = vmatpush.bf16.msra.mxu0 %v764
    %979 = vmatpush.bf16.msra.mxu0 %v760
    %980 = vmatpush.bf16.msra.mxu0 %v756
    %981 = vmatpush.bf16.msra.mxu0 %v752
    %982 = vmatpush.bf16.msra.mxu0 %v748
    %983 = vmatpush.bf16.msra.mxu0 %v744
    %984 = vmatpush.bf16.msra.mxu0 %v740
    %985 = vmatmul.bf16.gmra.mxu0 %v193
    %v986 = vpop.f32.mrf.mxu0
    %v987 = vadd.f32 %v974, %v986
    %v988 = vpop.f32.mrf.mxu0
    %989 = vdwg.mxu0
    %990 = vmatpush.bf16.msra.mxu0 %v800
    %991 = vmatpush.bf16.msra.mxu0 %v796
    %992 = vmatpush.bf16.msra.mxu0 %v792
    %993 = vmatpush.bf16.msra.mxu0 %v788
    %994 = vmatpush.bf16.msra.mxu0 %v784
    %995 = vmatpush.bf16.msra.mxu0 %v780
    %996 = vmatpush.bf16.msra.mxu0 %v776
    %997 = vmatpush.bf16.msra.mxu0 %v772
    %998 = vmatmul.bf16.gmra.mxu0 %v194
    %v999 = vpop.f32.mrf.mxu0
    %v1000 = vadd.f32 %v987, %v999
    %v1001 = vpop.f32.mrf.mxu0
    %1002 = vdwg.mxu0
    %1003 = vmatpush.bf16.msra.mxu0 %v832
    %1004 = vmatpush.bf16.msra.mxu0 %v828
    %1005 = vmatpush.bf16.msra.mxu0 %v824
    %1006 = vmatpush.bf16.msra.mxu0 %v820
    %1007 = vmatpush.bf16.msra.mxu0 %v816
    %1008 = vmatpush.bf16.msra.mxu0 %v812
    %1009 = vmatpush.bf16.msra.mxu0 %v808
    %1010 = vmatpush.bf16.msra.mxu0 %v804
    %1011 = vmatmul.bf16.gmra.mxu0 %v195
    %v1012 = vpop.f32.mrf.mxu0
    %v1013 = vadd.f32 %v1000, %v1012
    %v1014 = vpop.f32.mrf.mxu0
    %1015 = vdwg.mxu0
    %1016 = vmatpush.bf16.msra.mxu0 %v737
    %1017 = vmatpush.bf16.msra.mxu0 %v733
    %1018 = vmatpush.bf16.msra.mxu0 %v729
    %1019 = vmatpush.bf16.msra.mxu0 %v725
    %1020 = vmatpush.bf16.msra.mxu0 %v721
    %1021 = vmatpush.bf16.msra.mxu0 %v717
    %1022 = vmatpush.bf16.msra.mxu0 %v713
    %1023 = vmatpush.bf16.msra.mxu0 %v709
    %1024 = vmatmul.bf16.gmra.mxu0 %v192
    %v1025 = vpop.f32.mrf.mxu0
    %v1026 = vadd.f32 0.0, %v1025
    %v1027 = vpop.f32.mrf.mxu0
    %1028 = vdwg.mxu0
    %1029 = vmatpush.bf16.msra.mxu0 %v769
    %1030 = vmatpush.bf16.msra.mxu0 %v765
    %1031 = vmatpush.bf16.msra.mxu0 %v761
    %1032 = vmatpush.bf16.msra.mxu0 %v757
    %1033 = vmatpush.bf16.msra.mxu0 %v753
    %1034 = vmatpush.bf16.msra.mxu0 %v749
    %1035 = vmatpush.bf16.msra.mxu0 %v745
    %1036 = vmatpush.bf16.msra.mxu0 %v741
    %1037 = vmatmul.bf16.gmra.mxu0 %v193
    %v1038 = vpop.f32.mrf.mxu0
    %v1039 = vadd.f32 %v1026, %v1038
    %v1040 = vpop.f32.mrf.mxu0
    %1041 = vdwg.mxu0
    %1042 = vmatpush.bf16.msra.mxu0 %v801
    %1043 = vmatpush.bf16.msra.mxu0 %v797
    %1044 = vmatpush.bf16.msra.mxu0 %v793
    %1045 = vmatpush.bf16.msra.mxu0 %v789
    %1046 = vmatpush.bf16.msra.mxu0 %v785
    %1047 = vmatpush.bf16.msra.mxu0 %v781
    %1048 = vmatpush.bf16.msra.mxu0 %v777
    %1049 = vmatpush.bf16.msra.mxu0 %v773
    %1050 = vmatmul.bf16.gmra.mxu0 %v194
    %v1051 = vpop.f32.mrf.mxu0
    %v1052 = vadd.f32 %v1039, %v1051
    %v1053 = vpop.f32.mrf.mxu0
    %1054 = vdwg.mxu0
    %1055 = vmatpush.bf16.msra.mxu0 %v833
    %1056 = vmatpush.bf16.msra.mxu0 %v829
    %1057 = vmatpush.bf16.msra.mxu0 %v825
    %1058 = vmatpush.bf16.msra.mxu0 %v821
    %1059 = vmatpush.bf16.msra.mxu0 %v817
    %1060 = vmatpush.bf16.msra.mxu0 %v813
    %1061 = vmatpush.bf16.msra.mxu0 %v809
    %1062 = vmatpush.bf16.msra.mxu0 %v805
    %1063 = vmatmul.bf16.gmra.mxu0 %v195
    %v1064 = vpop.f32.mrf.mxu0
    %v1065 = vadd.f32 %v1052, %v1064
    %v1066 = vpop.f32.mrf.mxu0
    %1067 = vdwg.mxu0
    %1068 = vmatpush.bf16.msra.mxu0 %v738
    %1069 = vmatpush.bf16.msra.mxu0 %v734
    %1070 = vmatpush.bf16.msra.mxu0 %v730
    %1071 = vmatpush.bf16.msra.mxu0 %v726
    %1072 = vmatpush.bf16.msra.mxu0 %v722
    %1073 = vmatpush.bf16.msra.mxu0 %v718
    %1074 = vmatpush.bf16.msra.mxu0 %v714
    %1075 = vmatpush.bf16.msra.mxu0 %v710
    %1076 = vmatmul.bf16.gmra.mxu0 %v192
    %v1077 = vpop.f32.mrf.mxu0
    %v1078 = vadd.f32 0.0, %v1077
    %v1079 = vpop.f32.mrf.mxu0
    %1080 = vdwg.mxu0
    %1081 = vmatpush.bf16.msra.mxu0 %v770
    %1082 = vmatpush.bf16.msra.mxu0 %v766
    %1083 = vmatpush.bf16.msra.mxu0 %v762
    %1084 = vmatpush.bf16.msra.mxu0 %v758
    %1085 = vmatpush.bf16.msra.mxu0 %v754
    %1086 = vmatpush.bf16.msra.mxu0 %v750
    %1087 = vmatpush.bf16.msra.mxu0 %v746
    %1088 = vmatpush.bf16.msra.mxu0 %v742
    %1089 = vmatmul.bf16.gmra.mxu0 %v193
    %v1090 = vpop.f32.mrf.mxu0
    %v1091 = vadd.f32 %v1078, %v1090
    %v1092 = vpop.f32.mrf.mxu0
    %1093 = vdwg.mxu0
    %1094 = vmatpush.bf16.msra.mxu0 %v802
    %1095 = vmatpush.bf16.msra.mxu0 %v798
    %1096 = vmatpush.bf16.msra.mxu0 %v794
    %1097 = vmatpush.bf16.msra.mxu0 %v790
    %1098 = vmatpush.bf16.msra.mxu0 %v786
    %1099 = vmatpush.bf16.msra.mxu0 %v782
    %1100 = vmatpush.bf16.msra.mxu0 %v778
    %1101 = vmatpush.bf16.msra.mxu0 %v774
    %1102 = vmatmul.bf16.gmra.mxu0 %v194
    %v1103 = vpop.f32.mrf.mxu0
    %v1104 = vadd.f32 %v1091, %v1103
    %v1105 = vpop.f32.mrf.mxu0
    %1106 = vdwg.mxu0
    %1107 = vmatpush.bf16.msra.mxu0 %v834
    %1108 = vmatpush.bf16.msra.mxu0 %v830
    %1109 = vmatpush.bf16.msra.mxu0 %v826
    %1110 = vmatpush.bf16.msra.mxu0 %v822
    %1111 = vmatpush.bf16.msra.mxu0 %v818
    %1112 = vmatpush.bf16.msra.mxu0 %v814
    %1113 = vmatpush.bf16.msra.mxu0 %v810
    %1114 = vmatpush.bf16.msra.mxu0 %v806
    %1115 = vmatmul.bf16.gmra.mxu0 %v195
    %v1116 = vpop.f32.mrf.mxu0
    %v1117 = vadd.f32 %v1104, %v1116
    %v1118 = vpop.f32.mrf.mxu0
    %1119 = vdwg.mxu0
    %1120 = vmatpush.bf16.msra.mxu0 %v739
    %1121 = vmatpush.bf16.msra.mxu0 %v735
    %1122 = vmatpush.bf16.msra.mxu0 %v731
    %1123 = vmatpush.bf16.msra.mxu0 %v727
    %1124 = vmatpush.bf16.msra.mxu0 %v723
    %1125 = vmatpush.bf16.msra.mxu0 %v719
    %1126 = vmatpush.bf16.msra.mxu0 %v715
    %1127 = vmatpush.bf16.msra.mxu0 %v711
    %1128 = vmatmul.bf16.gmra.mxu0 %v192
    %v1129 = vpop.f32.mrf.mxu0
    %v1130 = vadd.f32 0.0, %v1129
    %v1131 = vpop.f32.mrf.mxu0
    %1132 = vdwg.mxu0
    %1133 = vmatpush.bf16.msra.mxu0 %v771
    %1134 = vmatpush.bf16.msra.mxu0 %v767
    %1135 = vmatpush.bf16.msra.mxu0 %v763
    %1136 = vmatpush.bf16.msra.mxu0 %v759
    %1137 = vmatpush.bf16.msra.mxu0 %v755
    %1138 = vmatpush.bf16.msra.mxu0 %v751
    %1139 = vmatpush.bf16.msra.mxu0 %v747
    %1140 = vmatpush.bf16.msra.mxu0 %v743
    %1141 = vmatmul.bf16.gmra.mxu0 %v193
    %v1142 = vpop.f32.mrf.mxu0
    %v1143 = vadd.f32 %v1130, %v1142
    %v1144 = vpop.f32.mrf.mxu0
    %1145 = vdwg.mxu0
    %1146 = vmatpush.bf16.msra.mxu0 %v803
    %1147 = vmatpush.bf16.msra.mxu0 %v799
    %1148 = vmatpush.bf16.msra.mxu0 %v795
    %1149 = vmatpush.bf16.msra.mxu0 %v791
    %1150 = vmatpush.bf16.msra.mxu0 %v787
    %1151 = vmatpush.bf16.msra.mxu0 %v783
    %1152 = vmatpush.bf16.msra.mxu0 %v779
    %1153 = vmatpush.bf16.msra.mxu0 %v775
    %1154 = vmatmul.bf16.gmra.mxu0 %v194
    %v1155 = vpop.f32.mrf.mxu0
    %v1156 = vadd.f32 %v1143, %v1155
    %v1157 = vpop.f32.mrf.mxu0
    %1158 = vdwg.mxu0
    %1159 = vmatpush.bf16.msra.mxu0 %v835
    %1160 = vmatpush.bf16.msra.mxu0 %v831
    %1161 = vmatpush.bf16.msra.mxu0 %v827
    %1162 = vmatpush.bf16.msra.mxu0 %v823
    %1163 = vmatpush.bf16.msra.mxu0 %v819
    %1164 = vmatpush.bf16.msra.mxu0 %v815
    %1165 = vmatpush.bf16.msra.mxu0 %v811
    %1166 = vmatpush.bf16.msra.mxu0 %v807
    %1167 = vmatmul.bf16.gmra.mxu0 %v195
    %v1168 = vpop.f32.mrf.mxu0
    %v1169 = vadd.f32 %v1156, %v1168
    %v1170 = vpop.f32.mrf.mxu0
    %1171 = vdwg.mxu0
    %v1172 = vmax.f32 %v1013, 0.0
    %v1173 = vmax.f32 %v1065, 0.0
    %v1174 = vmax.f32 %v1117, 0.0
    %v1175 = vmax.f32 %v1169, 0.0
    %v1176 = vpack.c.bf16 %v1172, %v1172
    %v1177 = vpack.c.bf16 %v1173, %v1173
    %v1178 = vpack.c.bf16 %v1174, %v1174
    %v1179 = vpack.c.bf16 %v1175, %v1175
    %v1180 = vld [vmem:[%s5] sm:$0xf]
    %v1181 = vld [vmem:[%s5 + $0x4] sm:$0xf]
    %v1182 = vld [vmem:[%s5 + $0x8] sm:$0xf]
    %v1183 = vld [vmem:[%s5 + $0xc] sm:$0xf]
    %v1184 = vld [vmem:[%s5 + $0x10] sm:$0xf]
    %v1185 = vld [vmem:[%s5 + $0x14] sm:$0xf]
    %v1186 = vld [vmem:[%s5 + $0x18] sm:$0xf]
    %v1187 = vld [vmem:[%s5 + $0x1c] sm:$0xf]
    %v1188 = vld [vmem:[%s5 + $0x20] sm:$0xf]
    %v1189 = vld [vmem:[%s5 + $0x24] sm:$0xf]
    %v1190 = vld [vmem:[%s5 + $0x28] sm:$0xf]
    %v1191 = vld [vmem:[%s5 + $0x2c] sm:$0xf]
    %v1192 = vld [vmem:[%s5 + $0x30] sm:$0xf]
    %v1193 = vld [vmem:[%s5 + $0x34] sm:$0xf]
    %v1194 = vld [vmem:[%s5 + $0x38] sm:$0xf]
    %v1195 = vld [vmem:[%s5 + $0x3c] sm:$0xf]
    %v1196 = vld [vmem:[%s5 + $0x40] sm:$0xf]
    %v1197 = vld [vmem:[%s5 + $0x44] sm:$0xf]
    %v1198 = vld [vmem:[%s5 + $0x48] sm:$0xf]
    %v1199 = vld [vmem:[%s5 + $0x4c] sm:$0xf]
    %v1200 = vld [vmem:[%s5 + $0x50] sm:$0xf]
    %v1201 = vld [vmem:[%s5 + $0x54] sm:$0xf]
    %v1202 = vld [vmem:[%s5 + $0x58] sm:$0xf]
    %v1203 = vld [vmem:[%s5 + $0x5c] sm:$0xf]
    %v1204 = vld [vmem:[%s5 + $0x60] sm:$0xf]
    %v1205 = vld [vmem:[%s5 + $0x64] sm:$0xf]
    %v1206 = vld [vmem:[%s5 + $0x68] sm:$0xf]
    %v1207 = vld [vmem:[%s5 + $0x6c] sm:$0xf]
    %v1208 = vld [vmem:[%s5 + $0x70] sm:$0xf]
    %v1209 = vld [vmem:[%s5 + $0x74] sm:$0xf]
    %v1210 = vld [vmem:[%s5 + $0x78] sm:$0xf]
    %v1211 = vld [vmem:[%s5 + $0x7c] sm:$0xf]
    %v1212 = vld [vmem:[%s5 + $0x80] sm:$0xf]
    %v1213 = vld [vmem:[%s5 + $0x84] sm:$0xf]
    %v1214 = vld [vmem:[%s5 + $0x88] sm:$0xf]
    %v1215 = vld [vmem:[%s5 + $0x8c] sm:$0xf]
    %v1216 = vld [vmem:[%s5 + $0x90] sm:$0xf]
    %v1217 = vld [vmem:[%s5 + $0x94] sm:$0xf]
    %v1218 = vld [vmem:[%s5 + $0x98] sm:$0xf]
    %v1219 = vld [vmem:[%s5 + $0x9c] sm:$0xf]
    %v1220 = vld [vmem:[%s5 + $0xa0] sm:$0xf]
    %v1221 = vld [vmem:[%s5 + $0xa4] sm:$0xf]
    %v1222 = vld [vmem:[%s5 + $0xa8] sm:$0xf]
    %v1223 = vld [vmem:[%s5 + $0xac] sm:$0xf]
    %v1224 = vld [vmem:[%s5 + $0xb0] sm:$0xf]
    %v1225 = vld [vmem:[%s5 + $0xb4] sm:$0xf]
    %v1226 = vld [vmem:[%s5 + $0xb8] sm:$0xf]
    %v1227 = vld [vmem:[%s5 + $0xbc] sm:$0xf]
    %v1228 = vld [vmem:[%s5 + $0xc0] sm:$0xf]
    %v1229 = vld [vmem:[%s5 + $0xc4] sm:$0xf]
    %v1230 = vld [vmem:[%s5 + $0xc8] sm:$0xf]
    %v1231 = vld [vmem:[%s5 + $0xcc] sm:$0xf]
    %v1232 = vld [vmem:[%s5 + $0xd0] sm:$0xf]
    %v1233 = vld [vmem:[%s5 + $0xd4] sm:$0xf]
    %v1234 = vld [vmem:[%s5 + $0xd8] sm:$0xf]
    %v1235 = vld [vmem:[%s5 + $0xdc] sm:$0xf]
    %v1236 = vld [vmem:[%s5 + $0xe0] sm:$0xf]
    %v1237 = vld [vmem:[%s5 + $0xe4] sm:$0xf]
    %v1238 = vld [vmem:[%s5 + $0xe8] sm:$0xf]
    %v1239 = vld [vmem:[%s5 + $0xec] sm:$0xf]
    %v1240 = vld [vmem:[%s5 + $0xf0] sm:$0xf]
    %v1241 = vld [vmem:[%s5 + $0xf4] sm:$0xf]
    %v1242 = vld [vmem:[%s5 + $0xf8] sm:$0xf]
    %v1243 = vld [vmem:[%s5 + $0xfc] sm:$0xf]
    %v1308 = vunpack.c.l.b16 %v1180
    %v1309 = vunpack.c.l.b16 %v1181
    %v1310 = vunpack.c.l.b16 %v1182
    %v1311 = vunpack.c.l.b16 %v1183
    %v1312 = vunpack.c.l.b16 %v1184
    %v1313 = vunpack.c.l.b16 %v1185
    %v1314 = vunpack.c.l.b16 %v1186
    %v1315 = vunpack.c.l.b16 %v1187
    %v1316 = vunpack.c.l.b16 %v1188
    %v1317 = vunpack.c.l.b16 %v1189
    %v1318 = vunpack.c.l.b16 %v1190
    %v1319 = vunpack.c.l.b16 %v1191
    %v1320 = vunpack.c.l.b16 %v1192
    %v1321 = vunpack.c.l.b16 %v1193
    %v1322 = vunpack.c.l.b16 %v1194
    %v1323 = vunpack.c.l.b16 %v1195
    %v1324 = vunpack.c.l.b16 %v1196
    %v1325 = vunpack.c.l.b16 %v1197
    %v1326 = vunpack.c.l.b16 %v1198
    %v1327 = vunpack.c.l.b16 %v1199
    %v1328 = vunpack.c.l.b16 %v1200
    %v1329 = vunpack.c.l.b16 %v1201
    %v1330 = vunpack.c.l.b16 %v1202
    %v1331 = vunpack.c.l.b16 %v1203
    %v1332 = vunpack.c.l.b16 %v1204
    %v1333 = vunpack.c.l.b16 %v1205
    %v1334 = vunpack.c.l.b16 %v1206
    %v1335 = vunpack.c.l.b16 %v1207
    %v1336 = vunpack.c.l.b16 %v1208
    %v1337 = vunpack.c.l.b16 %v1209
    %v1338 = vunpack.c.l.b16 %v1210
    %v1339 = vunpack.c.l.b16 %v1211
    %v1340 = vunpack.c.l.b16 %v1212
    %v1341 = vunpack.c.l.b16 %v1213
    %v1342 = vunpack.c.l.b16 %v1214
    %v1343 = vunpack.c.l.b16 %v1215
    %v1344 = vunpack.c.l.b16 %v1216
    %v1345 = vunpack.c.l.b16 %v1217
    %v1346 = vunpack.c.l.b16 %v1218
    %v1347 = vunpack.c.l.b16 %v1219
    %v1348 = vunpack.c.l.b16 %v1220
    %v1349 = vunpack.c.l.b16 %v1221
    %v1350 = vunpack.c.l.b16 %v1222
    %v1351 = vunpack.c.l.b16 %v1223
    %v1352 = vunpack.c.l.b16 %v1224
    %v1353 = vunpack.c.l.b16 %v1225
    %v1354 = vunpack.c.l.b16 %v1226
    %v1355 = vunpack.c.l.b16 %v1227
    %v1356 = vunpack.c.l.b16 %v1228
    %v1357 = vunpack.c.l.b16 %v1229
    %v1358 = vunpack.c.l.b16 %v1230
    %v1359 = vunpack.c.l.b16 %v1231
    %v1360 = vunpack.c.l.b16 %v1232
    %v1361 = vunpack.c.l.b16 %v1233
    %v1362 = vunpack.c.l.b16 %v1234
    %v1363 = vunpack.c.l.b16 %v1235
    %v1364 = vunpack.c.l.b16 %v1236
    %v1365 = vunpack.c.l.b16 %v1237
    %v1366 = vunpack.c.l.b16 %v1238
    %v1367 = vunpack.c.l.b16 %v1239
    %v1368 = vunpack.c.l.b16 %v1240
    %v1369 = vunpack.c.l.b16 %v1241
    %v1370 = vunpack.c.l.b16 %v1242
    %v1371 = vunpack.c.l.b16 %v1243
    %v1372 = vpack.c.b16 %v1309, %v1308
    %v1373 = vpack.c.b16 %v1311, %v1310
    %v1374 = vpack.c.b16 %v1313, %v1312
    %v1375 = vpack.c.b16 %v1315, %v1314
    %v1376 = vpack.c.b16 %v1317, %v1316
    %v1377 = vpack.c.b16 %v1319, %v1318
    %v1378 = vpack.c.b16 %v1321, %v1320
    %v1379 = vpack.c.b16 %v1323, %v1322
    %v1380 = vpack.c.b16 %v1325, %v1324
    %v1381 = vpack.c.b16 %v1327, %v1326
    %v1382 = vpack.c.b16 %v1329, %v1328
    %v1383 = vpack.c.b16 %v1331, %v1330
    %v1384 = vpack.c.b16 %v1333, %v1332
    %v1385 = vpack.c.b16 %v1335, %v1334
    %v1386 = vpack.c.b16 %v1337, %v1336
    %v1387 = vpack.c.b16 %v1339, %v1338
    %v1388 = vpack.c.b16 %v1341, %v1340
    %v1389 = vpack.c.b16 %v1343, %v1342
    %v1390 = vpack.c.b16 %v1345, %v1344
    %v1391 = vpack.c.b16 %v1347, %v1346
    %v1392 = vpack.c.b16 %v1349, %v1348
    %v1393 = vpack.c.b16 %v1351, %v1350
    %v1394 = vpack.c.b16 %v1353, %v1352
    %v1395 = vpack.c.b16 %v1355, %v1354
    %v1396 = vpack.c.b16 %v1357, %v1356
    %v1397 = vpack.c.b16 %v1359, %v1358
    %v1398 = vpack.c.b16 %v1361, %v1360
    %v1399 = vpack.c.b16 %v1363, %v1362
    %v1400 = vpack.c.b16 %v1365, %v1364
    %v1401 = vpack.c.b16 %v1367, %v1366
    %v1402 = vpack.c.b16 %v1369, %v1368
    %v1403 = vpack.c.b16 %v1371, %v1370
    %1436 = vmatpush.bf16.msra.mxu0 %v1379
    %1437 = vmatpush.bf16.msra.mxu0 %v1378
    %1438 = vmatpush.bf16.msra.mxu0 %v1377
    %1439 = vmatpush.bf16.msra.mxu0 %v1376
    %1440 = vmatpush.bf16.msra.mxu0 %v1375
    %1441 = vmatpush.bf16.msra.mxu0 %v1374
    %1442 = vmatpush.bf16.msra.mxu0 %v1373
    %1443 = vmatpush.bf16.msra.mxu0 %v1372
    %1444 = vmatmul.bf16.gmra.mxu0 %v1176
    %v1445 = vpop.f32.mrf.mxu0
    %v1446 = vadd.f32 0.0, %v1445
    %v1447 = vpop.f32.mrf.mxu0
    %1448 = vdwg.mxu0
    %1449 = vmatpush.bf16.msra.mxu0 %v1387
    %1450 = vmatpush.bf16.msra.mxu0 %v1386
    %1451 = vmatpush.bf16.msra.mxu0 %v1385
    %1452 = vmatpush.bf16.msra.mxu0 %v1384
    %1453 = vmatpush.bf16.msra.mxu0 %v1383
    %1454 = vmatpush.bf16.msra.mxu0 %v1382
    %1455 = vmatpush.bf16.msra.mxu0 %v1381
    %1456 = vmatpush.bf16.msra.mxu0 %v1380
    %1457 = vmatmul.bf16.gmra.mxu0 %v1177
    %v1458 = vpop.f32.mrf.mxu0
    %v1459 = vadd.f32 %v1446, %v1458
    %v1460 = vpop.f32.mrf.mxu0
    %1461 = vdwg.mxu0
    %1462 = vmatpush.bf16.msra.mxu0 %v1395
    %1463 = vmatpush.bf16.msra.mxu0 %v1394
    %1464 = vmatpush.bf16.msra.mxu0 %v1393
    %1465 = vmatpush.bf16.msra.mxu0 %v1392
    %1466 = vmatpush.bf16.msra.mxu0 %v1391
    %1467 = vmatpush.bf16.msra.mxu0 %v1390
    %1468 = vmatpush.bf16.msra.mxu0 %v1389
    %1469 = vmatpush.bf16.msra.mxu0 %v1388
    %1470 = vmatmul.bf16.gmra.mxu0 %v1178
    %v1471 = vpop.f32.mrf.mxu0
    %v1472 = vadd.f32 %v1459, %v1471
    %v1473 = vpop.f32.mrf.mxu0
    %1474 = vdwg.mxu0
    %1475 = vmatpush.bf16.msra.mxu0 %v1403
    %1476 = vmatpush.bf16.msra.mxu0 %v1402
    %1477 = vmatpush.bf16.msra.mxu0 %v1401
    %1478 = vmatpush.bf16.msra.mxu0 %v1400
    %1479 = vmatpush.bf16.msra.mxu0 %v1399
    %1480 = vmatpush.bf16.msra.mxu0 %v1398
    %1481 = vmatpush.bf16.msra.mxu0 %v1397
    %1482 = vmatpush.bf16.msra.mxu0 %v1396
    %1483 = vmatmul.bf16.gmra.mxu0 %v1179
    %v1484 = vpop.f32.mrf.mxu0
    %v1485 = vadd.f32 %v1472, %v1484
    %v1486 = vpop.f32.mrf.mxu0
    %1487 = vdwg.mxu0
    %1488 = vst [vmem:[#allocation2] sm:$0xff] %v1485
    // Predicated region
    $region26: #{decoder_forward.1} parent=1 // pred_check
      _
    $region27: #{decoder_forward.1} parent=1 // pred_check_branch
      %1490 = sbr.rel (0) target = $region29
    $region28: #{decoder_forward.1} parent=1 // pred_region
      %1492 = vsyncadd [#allocation3], 0
      %s1494 = sshll.u32 [#allocation2], 4
      %s1495 = int_to_ptr.vmem [resolvable:$true] %s1494
      %s1496 = sshll.u32 %s6, 4
      %s1497 = int_to_ptr.hbm [resolvable:$true] %s1496
      %1499 = dma.vmem_to_hbm [thread:$0]  %s1495, 128, %s1497, [#allocation3]
    $region29: #{decoder_forward.1} parent=1 // pred_fallthru
      _
    // Predicated region
    $region30: #{decoder_forward.1} parent=1 // pred_check
      _
    $region31: #{decoder_forward.1} parent=1 // pred_check_branch
      %1501 = sbr.rel (0) target = $region33
    $region32: #{decoder_forward.1} parent=1 // pred_region
      %1503 = dma.done [#allocation3], 128
    $region33: #{decoder_forward.1} parent=1 // pred_fallthru
      _
    %1504 = vsyncpa [#allocation3], 1

</llo_original>
